<compile_context>
chip_gen: v7x
topology: tpu7x:2x2x1
jax: 0.10.0
libtpu: 0.0.40
codegen_flags: <defaults>
</compile_context>

<pallas_src>
import functools

import jax
import jax.numpy as jnp
from jax.experimental import pallas as pl
from jax.experimental.pallas import tpu as pltpu


def _pad_to(n, m):
    return ((n + m - 1) // m) * m


def _divisors(n):
    return [d for d in range(1, n + 1) if n % d == 0]


def _vmem_capacity_bytes():
    try:
        return int(pltpu.get_tpu_info().vmem_capacity_bytes)   # 128 MiB v5e/v6e, 64 MiB v7x
    except Exception:
        return 64 << 20                                        # conservative fallback


def _pick_block(cands, fits, steps_of, target_steps):
    """Largest candidate that fits VMEM while keeping >= target_steps grid
    steps; if none reaches the step target, smallest fitting (max steps); if
    nothing fits, smallest candidate."""
    fitting = [d for d in cands if fits(d)]
    if not fitting:
        return min(cands)
    good = [d for d in fitting if steps_of(d) >= target_steps]
    return max(good) if good else min(fitting)


# --------------------------- kernels -----------------------------------------


def _lca_kernel_flat(x_ref, p_ref, m_ref, ew_ref, eb_ref, bh_ref, bw_ref, o_ref):
    """Lane-dense path.  x block is (CB, L) with L = G*H*W (>=128 lanes)."""
    x = x_ref[...]                                                     # (CB, L)
    # Row + column sums of every channel in one exact 0/1 selection matmul on
    # the otherwise idle MXU; f32 accumulation.  1/W, 1/H are folded into the
    # per-channel weights on the host.
    s = jnp.dot(x, m_ref[...], preferred_element_type=jnp.float32)    # (CB, T)
    # Expand the packed (CB, 4G) depthwise-conv params to the (CB, T) mean
    # layout with two tiny exact 0/1 matmuls (MXU has huge slack here).
    wm = jnp.dot(p_ref[...], ew_ref[...], preferred_element_type=jnp.float32)
    bm = jnp.dot(p_ref[...], eb_ref[...], preferred_element_type=jnp.float32)
    a = jax.nn.sigmoid(wm * s + bm).astype(x.dtype)                    # (CB, T)
    # Broadcast the H-gate / W-gate back to (CB, L) with zero-extended 0/1
    # selection matmuls (exact: one nonzero term per output element).
    g_h = jnp.dot(a, bh_ref[...], preferred_element_type=x.dtype)      # (CB, L)
    g_w = jnp.dot(a, bw_ref[...], preferred_element_type=x.dtype)      # (CB, L)
    o_ref[...] = (x * g_w * g_h).astype(o_ref.dtype)


def _lca_kernel_2d(x_ref, p_ref, o_ref, *, cb):
    """Fallback path for W >= 128 (already lane-dense): x block is (CB, H, W)."""
    ci = pl.program_id(1)
    p = p_ref[pl.ds(ci * cb, cb), :]                                   # (CB, 4) f32
    x = x_ref[...]                                                     # (CB, H, W)
    sh = jnp.sum(x, axis=2, keepdims=True, dtype=jnp.float32)          # (CB, H, 1)
    sw = jnp.sum(x, axis=1, keepdims=True, dtype=jnp.float32)          # (CB, 1, W)
    wh = p[:, 0:1][:, :, None]
    bh = p[:, 1:2][:, :, None]
    ww = p[:, 2:3][:, :, None]
    bw = p[:, 3:4][:, :, None]
    a_h = jax.nn.sigmoid(wh * sh + bh).astype(x.dtype)                 # (CB, H, 1)
    a_w = jax.nn.sigmoid(ww * sw + bw).astype(x.dtype)                 # (CB, 1, W)
    o_ref[...] = (x * a_w * a_h).astype(o_ref.dtype)


# --------------------------- wrapper ------------------------------------------


def lca_forward(x, w_h, b_h, w_w, b_w):
    """x: (B, C, H, W) NCHW; w_h/b_h/w_w/b_w: (C,) depthwise 1x1 conv params."""
    B, C, H, W = x.shape
    HW = H * W
    dt = x.dtype
    itemsize = jnp.dtype(dt).itemsize
    pack = max(8, 32 // itemsize)           # sublane pack: 8 f32, 16 bf16, 32 int8/fp8
    cap = _vmem_capacity_bytes()
    usable = (cap * 2) // 3                 # accounted budget; leaves Mosaic headroom
    target_steps = 8                        # >= 2 steps/TC on v7x, overlap on v5e/v6e

    # Per-channel depthwise-1x1 affine params; fold the pools' 1/W and 1/H
    # into the weights (exact, done on host in f32).
    p4 = jnp.stack([w_h.astype(jnp.float32) / W,
                    b_h.astype(jnp.float32),
                    w_w.astype(jnp.float32) / H,
                    b_w.astype(jnp.float32)], axis=1)                  # (C, 4)

    # ------------------ lane-dense flattened path (W < 128) ------------------
    if W < 128:
        # Group G channels into the lane dimension so the block's last dim is
        # >= 128 lanes even for tiny feature maps.
        g_cands = [g for g in _divisors(C) if g * HW >= 128]
        G = min(g_cands) if g_cands else C
        cg = C // G
        L = G * HW
        T = G * (H + W)
        Lp = _pad_to(L, 128)
        Tp = _pad_to(T, 128)

        # Resident constants (pipeline allocates 2 buffers even though their
        # block index never changes, so count them at 2x).
        const_bytes = (2 * itemsize * (_pad_to(L, 8) * Tp + 2 * _pad_to(T, 8) * Lp)
                       + 2 * 4 * 2 * _pad_to(4 * G, 8) * Tp)

        if const_bytes <= usable // 8:
            # Per channel-group row: 2 input + 2 output double buffers plus
            # in-kernel g_h/g_w/product temporaries (~7 slab rows), the packed
            # param row (2 bufs), and the f32 affine temps (s, wm, bm, a).
            row_bytes = (7 * Lp * itemsize
                         + 2 * _pad_to(4 * G, 128) * 4
                         + 4 * Tp * 4)
            avail = usable - const_bytes - (2 << 20)
            cands = [d for d in _divisors(cg) if d % pack == 0 or d == cg]
            CB = _pick_block(cands,
                             fits=lambda d: d * row_bytes <= avail,
                             steps_of=lambda d: B * (cg // d),
                             target_steps=target_steps)
            need = const_bytes + CB * row_bytes
            vmem_limit = int(min(cap * 7 // 8, max(2 * need, 32 << 20)))

            # Constant 0/1 matrices (block-diagonal over the G grouped channels).
            pidx = jnp.arange(HW)
            jidx = jnp.arange(H + W)
            sel_h = (pidx[:, None] // W == jidx[None, :]) & (jidx[None, :] < H)
            sel_w = (pidx[:, None] % W == jidx[None, :] - H) & (jidx[None, :] >= H)
            eyeG = jnp.eye(G, dtype=dt)
            m_mat = jnp.kron(eyeG, (sel_h | sel_w).astype(dt))          # (L, T)
            bh_mat = jnp.kron(eyeG, sel_h.T.astype(dt))                 # (T, L)
            bw_mat = jnp.kron(eyeG, sel_w.T.astype(dt))                 # (T, L)

            r = jnp.arange(4 * G)
            t = jnp.arange(T)
            same_g = (r[:, None] // 4) == (t[None, :] // (H + W))
            is_h = (t[None, :] % (H + W)) < H
            k = r[:, None] % 4
            ew_mat = (same_g & (((k == 0) & is_h) | ((k == 2) & ~is_h))
                      ).astype(jnp.float32)                             # (4G, T)
            eb_mat = (same_g & (((k == 1) & is_h) | ((k == 3) & ~is_h))
                      ).astype(jnp.float32)                             # (4G, T)

            p_g = p4.reshape(cg, 4 * G)                                 # (C//G, 4G)
            x_flat = x.reshape(B, cg, L)

            cost = pl.CostEstimate(
                flops=B * cg * (6 * L * T + 3 * L),
                transcendentals=B * C * (H + W),
                bytes_accessed=(2 * B * C * HW + 4 * C) * itemsize)

            slab_spec = pl.BlockSpec((None, CB, L), lambda b, c: (b, c, 0))
            const_spec = lambda shape: pl.BlockSpec(shape, lambda b, c: (0, 0))

            out = pl.pallas_call(
                _lca_kernel_flat,
                out_shape=jax.ShapeDtypeStruct((B, cg, L), dt),
                grid=(B, cg // CB),
                in_specs=[slab_spec,
                          pl.BlockSpec((CB, 4 * G), lambda b, c: (c, 0)),
                          const_spec((L, T)),
                          const_spec((4 * G, T)),
                          const_spec((4 * G, T)),
                          const_spec((T, L)),
                          const_spec((T, L))],
                out_specs=slab_spec,
                compiler_params=pltpu.CompilerParams(
                    dimension_semantics=("parallel", "parallel"),
                    vmem_limit_bytes=vmem_limit),
                cost_estimate=cost,
            )(x_flat, p_g, m_mat, ew_mat, eb_mat, bh_mat, bw_mat)
            return out.reshape(B, C, H, W)

    # ------------------ NCHW fallback (W >= 128, or constants too big) -------
    row_bytes = 7 * _pad_to(H, pack) * _pad_to(W, 128) * itemsize
    p_bytes = 2 * _pad_to(C, 8) * 128 * 4        # full (C,4) f32 table, 2 buffers
    avail = usable - p_bytes - (2 << 20)
    cands = _divisors(C)                          # leading dim: no 8-alignment needed
    CB = _pick_block(cands,
                     fits=lambda d: d * row_bytes <= avail,
                     steps_of=lambda d: B * (C // d),
                     target_steps=target_steps)
    # TODO(synk): for feature maps so large that even CB=1 exceeds the budget,
    # the H axis would need a two-pass tiled mean; not implemented here.
    need = p_bytes + CB * row_bytes
    vmem_limit = int(min(cap * 7 // 8, max(2 * need, 32 << 20)))

    cost = pl.CostEstimate(
        flops=5 * B * C * HW,
        transcendentals=B * C * (H + W),
        bytes_accessed=(2 * B * C * HW + 4 * C) * itemsize)

    slab_spec = pl.BlockSpec((None, CB, H, W), lambda b, c: (b, c, 0, 0))
    return pl.pallas_call(
        functools.partial(_lca_kernel_2d, cb=CB),
        out_shape=jax.ShapeDtypeStruct((B, C, H, W), dt),
        grid=(B, C // CB),
        in_specs=[slab_spec,
                  pl.BlockSpec((C, 4), lambda b, c: (0, 0))],
        out_specs=slab_spec,
        compiler_params=pltpu.CompilerParams(
            dimension_semantics=("parallel", "parallel"),
            vmem_limit_bytes=vmem_limit),
        cost_estimate=cost,
    )(x, p4)


def lca_reference(x, w_h, b_h, w_w, b_w):
    """Pure-JAX reference mirroring the PyTorch forward."""
    mh = jnp.mean(x, axis=3, keepdims=True)                           # (B,C,H,1)
    mw = jnp.mean(x, axis=2, keepdims=True)                           # (B,C,1,W)
    a_h = jax.nn.sigmoid(w_h[None, :, None, None] * mh + b_h[None, :, None, None])
    a_w = jax.nn.sigmoid(w_w[None, :, None, None] * mw + b_w[None, :, None, None])
    return x * a_w * a_h


if __name__ == "__main__":
    B, C, H, W = 2, 4, 16, 16
    key = jax.random.PRNGKey(0)
    kx, kwh, kbh, kww, kbw = jax.random.split(key, 5)

    x = jax.random.normal(kx, (B, C, H, W), dtype=jnp.float32)
    # Depthwise 1x1 conv params: PyTorch weight shape (C,1,1,1), bias (C,).
    w_h = jax.random.normal(kwh, (C,), dtype=jnp.float32) * 0.5
    b_h = jax.random.normal(kbh, (C,), dtype=jnp.float32) * 0.1
    w_w = jax.random.normal(kww, (C,), dtype=jnp.float32) * 0.5
    b_w = jax.random.normal(kbw, (C,), dtype=jnp.float32) * 0.1

    out = lca_forward(x, w_h, b_h, w_w, b_w)
    out = jax.block_until_ready(out)

    ref = lca_reference(x, w_h, b_h, w_w, b_w)
    assert out.shape == (B, C, H, W)
    assert jnp.allclose(out, ref, atol=1e-5, rtol=1e-5)

    print("KERNEL_OK")
</pallas_src>

<mosaic_0001>
module attributes {stable_mosaic.version = 11 : i64} {
  func.func @_lca_kernel_flat(%arg0: i32, %arg1: i32, %arg2: memref<1x4x256xf32, #tpu.memory_space<vmem>>, %arg3: memref<4x4xf32, #tpu.memory_space<vmem>>, %arg4: memref<256x32xf32, #tpu.memory_space<vmem>>, %arg5: memref<4x32xf32, #tpu.memory_space<vmem>>, %arg6: memref<4x32xf32, #tpu.memory_space<vmem>>, %arg7: memref<32x256xf32, #tpu.memory_space<vmem>>, %arg8: memref<32x256xf32, #tpu.memory_space<vmem>>, %arg9: memref<1x4x256xf32, #tpu.memory_space<vmem>>) attributes {dimension_semantics = [#tpu.dimension_semantics<parallel>, #tpu.dimension_semantics<parallel>], iteration_bounds = array<i64: 2, 1>, scalar_prefetch = 0 : i64, scratch_operands = 0 : i64, tpu.core_type = #tpu.core_type<tc>, window_params = [{transform_indices = @transform_0, window_bounds = array<i64: 1, 4, 256>}, {transform_indices = @transform_1, window_bounds = array<i64: 4, 4>}, {pipeline_mode = #tpu.pipeline_mode<synchronous>, transform_indices = @transform_2, window_bounds = array<i64: 256, 32>}, {pipeline_mode = #tpu.pipeline_mode<synchronous>, transform_indices = @transform_3, window_bounds = array<i64: 4, 32>}, {pipeline_mode = #tpu.pipeline_mode<synchronous>, transform_indices = @transform_4, window_bounds = array<i64: 4, 32>}, {pipeline_mode = #tpu.pipeline_mode<synchronous>, transform_indices = @transform_5, window_bounds = array<i64: 32, 256>}, {pipeline_mode = #tpu.pipeline_mode<synchronous>, transform_indices = @transform_6, window_bounds = array<i64: 32, 256>}, {transform_indices = @transform_7, window_bounds = array<i64: 1, 4, 256>}]} {
    %c0 = arith.constant 0 : index
    %c0_0 = arith.constant 0 : index
    %c0_1 = arith.constant 0 : index
    %0 = vector.load %arg2[%c0, %c0_0, %c0_1] : memref<1x4x256xf32, #tpu.memory_space<vmem>>, vector<1x4x256xf32>
    %1 = vector.shape_cast %0 : vector<1x4x256xf32> to vector<4x256xf32>
    %c0_2 = arith.constant 0 : index
    %c0_3 = arith.constant 0 : index
    %2 = vector.load %arg4[%c0_2, %c0_3] : memref<256x32xf32, #tpu.memory_space<vmem>>, vector<256x32xf32>
    %cst = arith.constant dense<0.000000e+00> : vector<4x32xf32>
    %3 = tpu.matmul %1, %2, %cst {dimension_numbers = #tpu.dot_dimension_numbers<[1], [0], [0], [1], [0, 0, 1, 1], [], []>} : vector<4x256xf32>, vector<256x32xf32>, vector<4x32xf32> -> vector<4x32xf32>
    %c0_4 = arith.constant 0 : index
    %c0_5 = arith.constant 0 : index
    %4 = vector.load %arg3[%c0_4, %c0_5] : memref<4x4xf32, #tpu.memory_space<vmem>>, vector<4x4xf32>
    %c0_6 = arith.constant 0 : index
    %c0_7 = arith.constant 0 : index
    %5 = vector.load %arg5[%c0_6, %c0_7] : memref<4x32xf32, #tpu.memory_space<vmem>>, vector<4x32xf32>
    %cst_8 = arith.constant dense<0.000000e+00> : vector<4x32xf32>
    %6 = tpu.matmul %4, %5, %cst_8 {dimension_numbers = #tpu.dot_dimension_numbers<[1], [0], [0], [1], [0, 0, 1, 1], [], []>} : vector<4x4xf32>, vector<4x32xf32>, vector<4x32xf32> -> vector<4x32xf32>
    %c0_9 = arith.constant 0 : index
    %c0_10 = arith.constant 0 : index
    %7 = vector.load %arg3[%c0_9, %c0_10] : memref<4x4xf32, #tpu.memory_space<vmem>>, vector<4x4xf32>
    %c0_11 = arith.constant 0 : index
    %c0_12 = arith.constant 0 : index
    %8 = vector.load %arg6[%c0_11, %c0_12] : memref<4x32xf32, #tpu.memory_space<vmem>>, vector<4x32xf32>
    %cst_13 = arith.constant dense<0.000000e+00> : vector<4x32xf32>
    %9 = tpu.matmul %7, %8, %cst_13 {dimension_numbers = #tpu.dot_dimension_numbers<[1], [0], [0], [1], [0, 0, 1, 1], [], []>} : vector<4x4xf32>, vector<4x32xf32>, vector<4x32xf32> -> vector<4x32xf32>
    %10 = arith.mulf %6, %3 : vector<4x32xf32>
    %11 = arith.addf %10, %9 : vector<4x32xf32>
    %12 = arith.negf %11 : vector<4x32xf32>
    %13 = math.exp %12 : vector<4x32xf32>
    %cst_14 = arith.constant 1.000000e+00 : f32
    %14 = vector.broadcast %cst_14 : f32 to vector<4x32xf32>
    %15 = arith.addf %14, %13 : vector<4x32xf32>
    %16 = arith.divf %14, %15 : vector<4x32xf32>
    %c0_15 = arith.constant 0 : index
    %c0_16 = arith.constant 0 : index
    %17 = vector.load %arg7[%c0_15, %c0_16] : memref<32x256xf32, #tpu.memory_space<vmem>>, vector<32x256xf32>
    %cst_17 = arith.constant dense<0.000000e+00> : vector<4x256xf32>
    %18 = tpu.matmul %16, %17, %cst_17 {dimension_numbers = #tpu.dot_dimension_numbers<[1], [0], [0], [1], [0, 0, 1, 1], [], []>} : vector<4x32xf32>, vector<32x256xf32>, vector<4x256xf32> -> vector<4x256xf32>
    %c0_18 = arith.constant 0 : index
    %c0_19 = arith.constant 0 : index
    %19 = vector.load %arg8[%c0_18, %c0_19] : memref<32x256xf32, #tpu.memory_space<vmem>>, vector<32x256xf32>
    %cst_20 = arith.constant dense<0.000000e+00> : vector<4x256xf32>
    %20 = tpu.matmul %16, %19, %cst_20 {dimension_numbers = #tpu.dot_dimension_numbers<[1], [0], [0], [1], [0, 0, 1, 1], [], []>} : vector<4x32xf32>, vector<32x256xf32>, vector<4x256xf32> -> vector<4x256xf32>
    %21 = arith.mulf %1, %20 : vector<4x256xf32>
    %22 = arith.mulf %21, %18 : vector<4x256xf32>
    %c0_21 = arith.constant 0 : index
    %c0_22 = arith.constant 0 : index
    %c0_23 = arith.constant 0 : index
    %23 = vector.load %arg9[%c0_21, %c0_22, %c0_23] : memref<1x4x256xf32, #tpu.memory_space<vmem>>, vector<1x4x256xf32>
    %24 = vector.shape_cast %23 : vector<1x4x256xf32> to vector<4x256xf32>
    %25 = vector.shape_cast %22 : vector<4x256xf32> to vector<1x4x256xf32>
    tpu.vector_store %arg9[%c0_21, %c0_22, %c0_23], %25 {strides = array<i32>} : memref<1x4x256xf32, #tpu.memory_space<vmem>>, vector<1x4x256xf32>,
    return
  }
  func.func @transform_0(%arg0: i32, %arg1: i32) -> (i32, i32, i32) {
    %c0_i32 = arith.constant 0 : i32
    %c0_i32_0 = arith.constant 0 : i32
    return %arg0, %arg1, %c0_i32 : i32, i32, i32
  }
  func.func @transform_1(%arg0: i32, %arg1: i32) -> (i32, i32) {
    %c0_i32 = arith.constant 0 : i32
    %c0_i32_0 = arith.constant 0 : i32
    return %arg1, %c0_i32 : i32, i32
  }
  func.func @transform_2(%arg0: i32, %arg1: i32) -> (i32, i32) {
    %c0_i32 = arith.constant 0 : i32
    %c0_i32_0 = arith.constant 0 : i32
    %c0_i32_1 = arith.constant 0 : i32
    return %c0_i32, %c0_i32_0 : i32, i32
  }
  func.func @transform_3(%arg0: i32, %arg1: i32) -> (i32, i32) {
    %c0_i32 = arith.constant 0 : i32
    %c0_i32_0 = arith.constant 0 : i32
    %c0_i32_1 = arith.constant 0 : i32
    return %c0_i32, %c0_i32_0 : i32, i32
  }
  func.func @transform_4(%arg0: i32, %arg1: i32) -> (i32, i32) {
    %c0_i32 = arith.constant 0 : i32
    %c0_i32_0 = arith.constant 0 : i32
    %c0_i32_1 = arith.constant 0 : i32
    return %c0_i32, %c0_i32_0 : i32, i32
  }
  func.func @transform_5(%arg0: i32, %arg1: i32) -> (i32, i32) {
    %c0_i32 = arith.constant 0 : i32
    %c0_i32_0 = arith.constant 0 : i32
    %c0_i32_1 = arith.constant 0 : i32
    return %c0_i32, %c0_i32_0 : i32, i32
  }
  func.func @transform_6(%arg0: i32, %arg1: i32) -> (i32, i32) {
    %c0_i32 = arith.constant 0 : i32
    %c0_i32_0 = arith.constant 0 : i32
    %c0_i32_1 = arith.constant 0 : i32
    return %c0_i32, %c0_i32_0 : i32, i32
  }
  func.func @transform_7(%arg0: i32, %arg1: i32) -> (i32, i32, i32) {
    %c0_i32 = arith.constant 0 : i32
    %c0_i32_0 = arith.constant 0 : i32
    return %arg0, %arg1, %c0_i32 : i32, i32, i32
  }
}

</mosaic_0001>

<llo_original>
// kernel: tpu_custom_call.1
$region0: #{tpu_custom_call.1}
  #allocation0 [shape = 'u32[]', space=smem, size = 0x4, offset = 0x4, fixed_abs, tag = 'smem constant byte address 0x4 - core index']
  #allocation1 [shape = 'u32[144,128]{1,0:T(1,128)}', space=vmem, size = 0x12000, scoped, tag = 'internal scratch']
  %s0 = inlined_call_operand.vmem [shape: f32[2,4,256], index: 0, kind: input, shape index: {}]
  %s1 = inlined_call_operand.vmem [shape: f32[4,4], index: 1, kind: input, shape index: {}]
  %s2 = inlined_call_operand.vmem [shape: f32[256,32], index: 2, kind: input, shape index: {}]
  %s3 = inlined_call_operand.vmem [shape: f32[4,32], index: 3, kind: input, shape index: {}]
  %s4 = inlined_call_operand.vmem [shape: f32[4,32], index: 4, kind: input, shape index: {}]
  %s5 = inlined_call_operand.vmem [shape: f32[32,256], index: 5, kind: input, shape index: {}]
  %s6 = inlined_call_operand.vmem [shape: f32[32,256], index: 6, kind: input, shape index: {}]
  %s7 = inlined_call_operand.hbm [shape: f32[2,4,256], index: 7, kind: output, shape index: {}]
  %s8 = sld [smem:[#allocation0]]
  $region61: #{tpu_custom_call.1} parent=0
    _
  %s10 = ssub.s32 1, %s8
  %s11 = scalar_select 0, %s10, %s8
  $region1: #{tpu_custom_call.1} parent=0
    #allocation2 [shape = 'u8[8192]{0}', space=vmem, size = 0x2000, scoped, tag = 'output window, operand 0']
    #allocation3 [shape = 's32[2]{0}', space=sflag, size = 0x8, scoped, tag = 'scoped memory for tpu_custom_call.1']
    %12 = vsyncpa [#allocation3], 0
    %s13 = scalar_lea.sflag [#allocation3], 1
    %14 = vsyncpa %s13, 0
    loop: start=0, step=1, limit=4
    $region2: #{tpu_custom_call.1} parent=1 // loop_pre_header
      _
    $region3: #{tpu_custom_call.1} parent=1 // loop_header
      %s16 = sphi 0, %s20
      %p17 = scmp.ge.s32.totalorder %s16, 4
      %s23 = sphi 0, %s35
      %s24 = sphi 0, %s31
      %s25 = sphi 0, %s23
      %s26 = sphi 0, %s24
      %s27 = sphi 0, %s25
      %s28 = sphi 0, %s26
      %s40 = sphi 0, %s42
      %s43 = sphi 0, %s40
      %s44 = sphi 0, %s43
      %s60 = sphi 0, %s44
      %s66 = sphi 0, %s68
      %s69 = sphi 0, %s66
      %s70 = sphi 0, %s69
      %s86 = sphi 0, %s70
      %s90 = sphi 0, %s90
      %s92 = sphi 0, %s90
      %s93 = sphi 0, %s92
      %s107 = sphi 0, %s93
      %s111 = sphi 0, %s111
      %s113 = sphi 0, %s111
      %s114 = sphi 0, %s113
      %s128 = sphi 0, %s114
      %s132 = sphi 0, %s132
      %s134 = sphi 0, %s132
      %s135 = sphi 0, %s134
      %s149 = sphi 0, %s135
      %s153 = sphi 0, %s153
      %s155 = sphi 0, %s153
      %s156 = sphi 0, %s155
      %s170 = sphi 0, %s156
      %s174 = sphi 0, %s174
      %s176 = sphi 0, %s174
      %s177 = sphi 0, %s176
      %s191 = sphi 0, %s177
      %s199 = sphi 0, %s201
      %s202 = sphi 0, %s199
      %s203 = sphi 0, %s202
      %s219 = sphi 0, %s203
    $region4: #{tpu_custom_call.1} parent=1 // loop_header_branch
      %19 = sbr.rel (%p17) target = $region8
    $region5: #{tpu_custom_call.1} parent=1 // loop_body
      %s21 = ssub.s32 %s16, 1
      %s22 = ssub.s32 %s16, 2
      %s29 = sadd.s32 1, %s24
      %p30 = scmp.ge.s32.totalorder %s29, 1
      %s31 = scalar_select %p30, 0, %s29
      %s32 = sadd.s32 1, %s23
      %s33 = scalar_select %p30, %s32, %s23
      %p34 = scmp.ge.s32.totalorder %s33, 2
      %s35 = scalar_select %p34, 0, %s33
      %s36 = ssub.s32 %s23, %s35
      %s37 = ssub.s32 %s24, %s31
      %s38 = sor.u32 %s36, %s37
      %p39 = scmp.eq.s32.totalorder %s38, 0
      %s41 = sadd.s32 %s40, 1
      %s42 = scalar_select %p39, %s40, %s41
      %p45 = pneg %p39
      %p46 = scmp.eq.s32.totalorder %s16, 1
      %p47 = por %p45, %p46
      %p48 = scmp.ne.s32.totalorder %s40, %s43
      %p49 = scmp.eq.s32.totalorder %s16, 0
      %p50 = por %p48, %p49
      %p51 = scmp.ne.s32.totalorder %s40, %s43
      %p52 = scmp.eq.s32.totalorder %s21, 1
      %p53 = por %p51, %p52
      %p54 = scmp.ne.s32.totalorder %s43, %s44
      %p55 = scmp.eq.s32.totalorder %s21, 0
      %p56 = por %p54, %p55
      %p57 = scmp.ne.s32.totalorder %s43, %s44
      %p58 = scmp.eq.s32.totalorder %s22, 1
      %p59 = por %p57, %p58
      %p61 = scmp.ne.s32.totalorder %s44, %s60
      %p62 = scmp.eq.s32.totalorder %s22, 0
      %p63 = por %p61, %p62
      %s64 = ssub.s32 %s24, %s31
      %p65 = scmp.eq.s32.totalorder %s64, 0
      %s67 = sadd.s32 %s66, 1
      %s68 = scalar_select %p65, %s66, %s67
      %p71 = pneg %p65
      %p72 = scmp.eq.s32.totalorder %s16, 1
      %p73 = por %p71, %p72
      %p74 = scmp.ne.s32.totalorder %s66, %s69
      %p75 = scmp.eq.s32.totalorder %s16, 0
      %p76 = por %p74, %p75
      %p77 = scmp.ne.s32.totalorder %s66, %s69
      %p78 = scmp.eq.s32.totalorder %s21, 1
      %p79 = por %p77, %p78
      %p80 = scmp.ne.s32.totalorder %s69, %s70
      %p81 = scmp.eq.s32.totalorder %s21, 0
      %p82 = por %p80, %p81
      %p83 = scmp.ne.s32.totalorder %s69, %s70
      %p84 = scmp.eq.s32.totalorder %s22, 1
      %p85 = por %p83, %p84
      %p87 = scmp.ne.s32.totalorder %s70, %s86
      %p88 = scmp.eq.s32.totalorder %s22, 0
      %p89 = por %p87, %p88
      %s91 = sadd.s32 %s90, 1
      %p94 = scmp.eq.s32.totalorder %s16, 1
      %p95 = scmp.ne.s32.totalorder %s90, %s92
      %p96 = scmp.eq.s32.totalorder %s16, 0
      %p97 = por %p95, %p96
      %p98 = scmp.ne.s32.totalorder %s90, %s92
      %p99 = scmp.eq.s32.totalorder %s21, 1
      %p100 = por %p98, %p99
      %p101 = scmp.ne.s32.totalorder %s92, %s93
      %p102 = scmp.eq.s32.totalorder %s21, 0
      %p103 = por %p101, %p102
      %p104 = scmp.ne.s32.totalorder %s92, %s93
      %p105 = scmp.eq.s32.totalorder %s22, 1
      %p106 = por %p104, %p105
      %p108 = scmp.ne.s32.totalorder %s93, %s107
      %p109 = scmp.eq.s32.totalorder %s22, 0
      %p110 = por %p108, %p109
      %s112 = sadd.s32 %s111, 1
      %p115 = scmp.eq.s32.totalorder %s16, 1
      %p116 = scmp.ne.s32.totalorder %s111, %s113
      %p117 = scmp.eq.s32.totalorder %s16, 0
      %p118 = por %p116, %p117
      %p119 = scmp.ne.s32.totalorder %s111, %s113
      %p120 = scmp.eq.s32.totalorder %s21, 1
      %p121 = por %p119, %p120
      %p122 = scmp.ne.s32.totalorder %s113, %s114
      %p123 = scmp.eq.s32.totalorder %s21, 0
      %p124 = por %p122, %p123
      %p125 = scmp.ne.s32.totalorder %s113, %s114
      %p126 = scmp.eq.s32.totalorder %s22, 1
      %p127 = por %p125, %p126
      %p129 = scmp.ne.s32.totalorder %s114, %s128
      %p130 = scmp.eq.s32.totalorder %s22, 0
      %p131 = por %p129, %p130
      %s133 = sadd.s32 %s132, 1
      %p136 = scmp.eq.s32.totalorder %s16, 1
      %p137 = scmp.ne.s32.totalorder %s132, %s134
      %p138 = scmp.eq.s32.totalorder %s16, 0
      %p139 = por %p137, %p138
      %p140 = scmp.ne.s32.totalorder %s132, %s134
      %p141 = scmp.eq.s32.totalorder %s21, 1
      %p142 = por %p140, %p141
      %p143 = scmp.ne.s32.totalorder %s134, %s135
      %p144 = scmp.eq.s32.totalorder %s21, 0
      %p145 = por %p143, %p144
      %p146 = scmp.ne.s32.totalorder %s134, %s135
      %p147 = scmp.eq.s32.totalorder %s22, 1
      %p148 = por %p146, %p147
      %p150 = scmp.ne.s32.totalorder %s135, %s149
      %p151 = scmp.eq.s32.totalorder %s22, 0
      %p152 = por %p150, %p151
      %s154 = sadd.s32 %s153, 1
      %p157 = scmp.eq.s32.totalorder %s16, 1
      %p158 = scmp.ne.s32.totalorder %s153, %s155
      %p159 = scmp.eq.s32.totalorder %s16, 0
      %p160 = por %p158, %p159
      %p161 = scmp.ne.s32.totalorder %s153, %s155
      %p162 = scmp.eq.s32.totalorder %s21, 1
      %p163 = por %p161, %p162
      %p164 = scmp.ne.s32.totalorder %s155, %s156
      %p165 = scmp.eq.s32.totalorder %s21, 0
      %p166 = por %p164, %p165
      %p167 = scmp.ne.s32.totalorder %s155, %s156
      %p168 = scmp.eq.s32.totalorder %s22, 1
      %p169 = por %p167, %p168
      %p171 = scmp.ne.s32.totalorder %s156, %s170
      %p172 = scmp.eq.s32.totalorder %s22, 0
      %p173 = por %p171, %p172
      %s175 = sadd.s32 %s174, 1
      %p178 = scmp.eq.s32.totalorder %s16, 1
      %p179 = scmp.ne.s32.totalorder %s174, %s176
      %p180 = scmp.eq.s32.totalorder %s16, 0
      %p181 = por %p179, %p180
      %p182 = scmp.ne.s32.totalorder %s174, %s176
      %p183 = scmp.eq.s32.totalorder %s21, 1
      %p184 = por %p182, %p183
      %p185 = scmp.ne.s32.totalorder %s176, %s177
      %p186 = scmp.eq.s32.totalorder %s21, 0
      %p187 = por %p185, %p186
      %p188 = scmp.ne.s32.totalorder %s176, %s177
      %p189 = scmp.eq.s32.totalorder %s22, 1
      %p190 = por %p188, %p189
      %p192 = scmp.ne.s32.totalorder %s177, %s191
      %p193 = scmp.eq.s32.totalorder %s22, 0
      %p194 = por %p192, %p193
      %s195 = ssub.s32 %s23, %s35
      %s196 = ssub.s32 %s24, %s31
      %s197 = sor.u32 %s195, %s196
      %p198 = scmp.eq.s32.totalorder %s197, 0
      %s200 = sadd.s32 %s199, 1
      %s201 = scalar_select %p198, %s199, %s200
      %p204 = pneg %p198
      %p205 = scmp.eq.s32.totalorder %s16, 1
      %p206 = por %p204, %p205
      %p207 = scmp.ne.s32.totalorder %s199, %s202
      %p208 = scmp.eq.s32.totalorder %s16, 0
      %p209 = por %p207, %p208
      %p210 = scmp.ne.s32.totalorder %s199, %s202
      %p211 = scmp.eq.s32.totalorder %s21, 1
      %p212 = por %p210, %p211
      %p213 = scmp.ne.s32.totalorder %s202, %s203
      %p214 = scmp.eq.s32.totalorder %s21, 0
      %p215 = por %p213, %p214
      %p216 = scmp.ne.s32.totalorder %s202, %s203
      %p217 = scmp.eq.s32.totalorder %s22, 1
      %p218 = por %p216, %p217
      %p220 = scmp.ne.s32.totalorder %s203, %s219
      %p221 = scmp.eq.s32.totalorder %s22, 0
      %p222 = por %p220, %p221
      %p223 = scmp.le.s32.totalorder 1, %s16
      %p224 = scmp.lt.s32.totalorder %s16, 3
      %p225 = pnand %p223, %p224
      %p226 = pneg %p225
      // Predicated region
      $region9: #{tpu_custom_call.1} parent=5 // pred_check
        _
      $region10: #{tpu_custom_call.1} parent=5 // pred_check_branch
        %228 = sbr.rel (%p225) target = $region12
      $region11: #{tpu_custom_call.1} parent=5 // pred_region
        %s229 = ssub.s32 %s16, 1
        // Predicated region
        $region13: #{tpu_custom_call.1} parent=11 // pred_check
          %p230 = pneg %p82
        $region14: #{tpu_custom_call.1} parent=11 // pred_check_branch
          %232 = sbr.rel (%p230) target = $region16
        $region15: #{tpu_custom_call.1} parent=11 // pred_region
          %p233 = scmp.lt.s32.totalorder %s26, 0
          %s234 = scalar_select %p233, %s26, 0
          %s235 = smul.addr %s234, 4
          %s236 = scalar_lea.vmem %s1, %s235
        $region16: #{tpu_custom_call.1} parent=11 // pred_fallthru
          _
        // Predicated region
        $region17: #{tpu_custom_call.1} parent=11 // pred_check
          %p237 = pneg %p103
        $region18: #{tpu_custom_call.1} parent=11 // pred_check_branch
          %239 = sbr.rel (%p237) target = $region20
        $region19: #{tpu_custom_call.1} parent=11 // pred_region
          _
        $region20: #{tpu_custom_call.1} parent=11 // pred_fallthru
          _
        // Predicated region
        $region21: #{tpu_custom_call.1} parent=11 // pred_check
          %p240 = pneg %p124
        $region22: #{tpu_custom_call.1} parent=11 // pred_check_branch
          %242 = sbr.rel (%p240) target = $region24
        $region23: #{tpu_custom_call.1} parent=11 // pred_region
          _
        $region24: #{tpu_custom_call.1} parent=11 // pred_fallthru
          _
        // Predicated region
        $region25: #{tpu_custom_call.1} parent=11 // pred_check
          %p243 = pneg %p145
        $region26: #{tpu_custom_call.1} parent=11 // pred_check_branch
          %245 = sbr.rel (%p243) target = $region28
        $region27: #{tpu_custom_call.1} parent=11 // pred_region
          _
        $region28: #{tpu_custom_call.1} parent=11 // pred_fallthru
          _
        // Predicated region
        $region29: #{tpu_custom_call.1} parent=11 // pred_check
          %p246 = pneg %p166
        $region30: #{tpu_custom_call.1} parent=11 // pred_check_branch
          %248 = sbr.rel (%p246) target = $region32
        $region31: #{tpu_custom_call.1} parent=11 // pred_region
          _
        $region32: #{tpu_custom_call.1} parent=11 // pred_fallthru
          _
        // Predicated region
        $region33: #{tpu_custom_call.1} parent=11 // pred_check
          %p249 = pneg %p187
        $region34: #{tpu_custom_call.1} parent=11 // pred_check_branch
          %251 = sbr.rel (%p249) target = $region36
        $region35: #{tpu_custom_call.1} parent=11 // pred_region
          _
        $region36: #{tpu_custom_call.1} parent=11 // pred_fallthru
          _
      $region12: #{tpu_custom_call.1} parent=5 // pred_fallthru
        _
      %p252 = scmp.lt.s32.totalorder %s16, 2
      // Predicated region
      $region37: #{tpu_custom_call.1} parent=5 // pred_check
        %p253 = pneg %p252
      $region38: #{tpu_custom_call.1} parent=5 // pred_check_branch
        %255 = sbr.rel (%p253) target = $region40
      $region39: #{tpu_custom_call.1} parent=5 // pred_region
        // Predicated region
        $region41: #{tpu_custom_call.1} parent=39 // pred_check
          %p256 = pneg %p50
        $region42: #{tpu_custom_call.1} parent=39 // pred_check_branch
          %258 = sbr.rel (%p256) target = $region44
        $region43: #{tpu_custom_call.1} parent=39 // pred_region
          %p259 = scmp.lt.s32.totalorder %s23, 1
          %s260 = scalar_select %p259, %s23, 1
          %p261 = scmp.lt.s32.totalorder %s24, 0
          %s262 = scalar_select %p261, %s24, 0
          %s263 = smul.addr %s262, 2
          %s264 = smul.addr %s260, 2
          %s265 = sadd.s32 %s263, %s264
          %s266 = smul.addr %s265, 4
          %s267 = scalar_lea.vmem %s0, %s266
        $region44: #{tpu_custom_call.1} parent=39 // pred_fallthru
          _
      $region40: #{tpu_custom_call.1} parent=5 // pred_fallthru
        _
      %p268 = scmp.le.s32.totalorder 1, %s16
      %p269 = scmp.lt.s32.totalorder %s16, 3
      %p270 = pnand %p268, %p269
      %p271 = pneg %p270
      // Predicated region
      $region45: #{tpu_custom_call.1} parent=5 // pred_check
        _
      $region46: #{tpu_custom_call.1} parent=5 // pred_check_branch
        %273 = sbr.rel (%p270) target = $region48
      $region47: #{tpu_custom_call.1} parent=5 // pred_region
        %s274 = ssub.s32 %s16, 1
        %p275 = scmp.lt.s32.totalorder %s25, 1
        %s276 = scalar_select %p275, %s25, 1
        %p277 = scmp.lt.s32.totalorder %s26, 0
        %s278 = scalar_select %p277, %s26, 0
        %s279 = smul.addr %s278, 2
        %s280 = smul.addr %s276, 2
        %s281 = sadd.s32 %s279, %s280
        %s282 = smul.addr %s281, 4
        %s283 = scalar_lea.vmem %s0, %s282
        %p284 = pneg %p56
        %p285 = pneg %p53
        %p286 = scmp.lt.s32.totalorder %s26, 0
        %s287 = scalar_select %p286, %s26, 0
        %s288 = smul.addr %s287, 4
        %s289 = scalar_lea.vmem %s1, %s288
        %p290 = pneg %p82
        %p291 = pneg %p79
        %p292 = pneg %p103
        %p293 = pneg %p100
        %p294 = pneg %p124
        %p295 = pneg %p121
        %p296 = pneg %p145
        %p297 = pneg %p142
        %p298 = pneg %p166
        %p299 = pneg %p163
        %p300 = pneg %p187
        %p301 = pneg %p184
        %p302 = pneg %p215
        %p303 = pneg %p212
        %s304 = sand.u32 %s202, 1
        %s305 = scalar_lea.sflag [#allocation3], %s304
        %s306 = sand.u32 %s202, 1
        %s307 = smul.addr %s306, 8
        %s308 = scalar_lea.vmem [#allocation2], %s307
        %p309 = scmp.lt.s32.totalorder %s25, 1
        %s310 = scalar_select %p309, %s25, 1
        %p311 = scmp.lt.s32.totalorder %s26, 0
        %s312 = scalar_select %p311, %s26, 0
        %s313 = smul.addr %s312, 2
        %s314 = smul.addr %s310, 2
        %s315 = sadd.s32 %s313, %s314
        %s316 = smul.addr %s315, 4
        %s317 = scalar_lea.vmem %s0, %s316
        %p318 = scmp.lt.s32.totalorder %s26, 0
        %s319 = scalar_select %p318, %s26, 0
        %s320 = smul.addr %s319, 4
        %s321 = scalar_lea.vmem %s1, %s320
        %v322 = vld [vmem:[%s317] sm:$0xff]
        %v323 = vld [vmem:[%s2] sm:$0xff]
        %v324 = vld [vmem:[%s2 + $0x8] sm:$0xff]
        %v325 = vld [vmem:[%s2 + $0x10] sm:$0xff]
        %v326 = vld [vmem:[%s2 + $0x18] sm:$0xff]
        %v327 = vld [vmem:[%s2 + $0x20] sm:$0xff]
        %v328 = vld [vmem:[%s2 + $0x28] sm:$0xff]
        %v329 = vld [vmem:[%s2 + $0x30] sm:$0xff]
        %v330 = vld [vmem:[%s2 + $0x38] sm:$0xff]
        %v331 = vld [vmem:[%s2 + $0x40] sm:$0xff]
        %v332 = vld [vmem:[%s2 + $0x48] sm:$0xff]
        %v333 = vld [vmem:[%s2 + $0x50] sm:$0xff]
        %v334 = vld [vmem:[%s2 + $0x58] sm:$0xff]
        %v335 = vld [vmem:[%s2 + $0x60] sm:$0xff]
        %v336 = vld [vmem:[%s2 + $0x68] sm:$0xff]
        %v337 = vld [vmem:[%s2 + $0x70] sm:$0xff]
        %v338 = vld [vmem:[%s2 + $0x78] sm:$0xff]
        %v339 = vld [vmem:[%s2 + $0x80] sm:$0xff]
        %v340 = vld [vmem:[%s2 + $0x88] sm:$0xff]
        %v341 = vld [vmem:[%s2 + $0x90] sm:$0xff]
        %v342 = vld [vmem:[%s2 + $0x98] sm:$0xff]
        %v343 = vld [vmem:[%s2 + $0xa0] sm:$0xff]
        %v344 = vld [vmem:[%s2 + $0xa8] sm:$0xff]
        %v345 = vld [vmem:[%s2 + $0xb0] sm:$0xff]
        %v346 = vld [vmem:[%s2 + $0xb8] sm:$0xff]
        %v347 = vld [vmem:[%s2 + $0xc0] sm:$0xff]
        %v348 = vld [vmem:[%s2 + $0xc8] sm:$0xff]
        %v349 = vld [vmem:[%s2 + $0xd0] sm:$0xff]
        %v350 = vld [vmem:[%s2 + $0xd8] sm:$0xff]
        %v351 = vld [vmem:[%s2 + $0xe0] sm:$0xff]
        %v352 = vld [vmem:[%s2 + $0xe8] sm:$0xff]
        %v353 = vld [vmem:[%s2 + $0xf0] sm:$0xff]
        %v354 = vld [vmem:[%s2 + $0xf8] sm:$0xff]
        %v356 = vcombine.high %v322, %v322
        %358 = vmatprep.subr.mxu0 0.0
        %359 = vmatpush1.msra.mxu0 %v323
        %360 = vmatprep.subr.mxu0 0.0
        %361 = vmatpush1.msra.mxu0 %v324
        %362 = vmatprep.subr.mxu0 0.0
        %363 = vmatpush1.msra.mxu0 %v325
        %364 = vmatprep.subr.mxu0 0.0
        %365 = vmatpush1.msra.mxu0 %v326
        %366 = vmatprep.subr.mxu0 0.0
        %367 = vmatpush1.msra.mxu0 %v327
        %368 = vmatprep.subr.mxu0 0.0
        %369 = vmatpush1.msra.mxu0 %v328
        %370 = vmatprep.subr.mxu0 0.0
        %371 = vmatpush1.msra.mxu0 %v329
        %372 = vmatprep.subr.mxu0 0.0
        %373 = vmatpush1.msra.mxu0 %v330
        %374 = vmatprep.subr.mxu0 0.0
        %375 = vmatpush1.msra.mxu0 %v331
        %376 = vmatprep.subr.mxu0 0.0
        %377 = vmatpush1.msra.mxu0 %v332
        %378 = vmatprep.subr.mxu0 0.0
        %379 = vmatpush1.msra.mxu0 %v333
        %380 = vmatprep.subr.mxu0 0.0
        %381 = vmatpush1.msra.mxu0 %v334
        %382 = vmatprep.subr.mxu0 0.0
        %383 = vmatpush1.msra.mxu0 %v335
        %384 = vmatprep.subr.mxu0 0.0
        %385 = vmatpush1.msra.mxu0 %v336
        %386 = vmatprep.subr.mxu0 0.0
        %387 = vmatpush1.msra.mxu0 %v337
        %388 = vmatprep.subr.mxu0 0.0
        %389 = vmatpush1.msra.mxu0 %v338
        %390 = vmatprep.subr.mxu0 0.0
        %391 = vmatpush1.msra.mxu0 %v339
        %392 = vmatprep.subr.mxu0 0.0
        %393 = vmatpush1.msra.mxu0 %v340
        %394 = vmatprep.subr.mxu0 0.0
        %395 = vmatpush1.msra.mxu0 %v341
        %396 = vmatprep.subr.mxu0 0.0
        %397 = vmatpush1.msra.mxu0 %v342
        %398 = vmatprep.subr.mxu0 0.0
        %399 = vmatpush1.msra.mxu0 %v343
        %400 = vmatprep.subr.mxu0 0.0
        %401 = vmatpush1.msra.mxu0 %v344
        %402 = vmatprep.subr.mxu0 0.0
        %403 = vmatpush1.msra.mxu0 %v345
        %404 = vmatprep.subr.mxu0 0.0
        %405 = vmatpush1.msra.mxu0 %v346
        %406 = vmatprep.subr.mxu0 0.0
        %407 = vmatpush1.msra.mxu0 %v347
        %408 = vmatprep.subr.mxu0 0.0
        %409 = vmatpush1.msra.mxu0 %v348
        %410 = vmatprep.subr.mxu0 0.0
        %411 = vmatpush1.msra.mxu0 %v349
        %412 = vmatprep.subr.mxu0 0.0
        %413 = vmatpush1.msra.mxu0 %v350
        %414 = vmatprep.subr.mxu0 0.0
        %415 = vmatpush1.msra.mxu0 %v351
        %416 = vmatprep.subr.mxu0 0.0
        %417 = vmatpush1.msra.mxu0 %v352
        %418 = vmatprep.subr.mxu0 0.0
        %419 = vmatpush1.msra.mxu0 %v353
        %420 = vmatprep.subr.mxu0 0.0
        %421 = vmatpush1.msra.mxu0 %v354
        %422 = vmatprep.mubr.f32.mxu0 %v356
        %423 = vmatmul.mubr.f32.gmra.mrb[0].mxu0 %v322
        %v424 = vpop.f32.mrb[0].mxu0
        %v425 = vadd.f32 0.0, %v424
        %v426 = vpop.f32.mrb[0].mxu0
        %427 = vdwg.mxu0
        %v428 = vld [vmem:[%s321] sm:$0xf]
        %v429 = vld [vmem:[%s3] sm:$0xf]
        %vm430 = vcmask 31744
        %v432 = vsel %vm430, %v428, 0
        %vm434 = vcmask 1043456
        %v436 = vsel %vm434, %v429, 0
        %438 = vmatprep.subr.mxu0 0.0
        %439 = vmatpush1.msra.mxu0 %v436
        %440 = vmatprep.subr.mxu0 0.0
        %441 = vmatpush1.msra.mxu0 0.0
        %442 = vmatprep.subr.mxu0 0.0
        %443 = vmatpush1.msra.mxu0 0.0
        %444 = vmatprep.subr.mxu0 0.0
        %445 = vmatpush1.msra.mxu0 0.0
        %446 = vmatprep.subr.mxu0 0.0
        %447 = vmatpush1.msra.mxu0 0.0
        %448 = vmatprep.subr.mxu0 0.0
        %449 = vmatpush1.msra.mxu0 0.0
        %450 = vmatprep.subr.mxu0 0.0
        %451 = vmatpush1.msra.mxu0 0.0
        %452 = vmatprep.subr.mxu0 0.0
        %453 = vmatpush1.msra.mxu0 0.0
        %454 = vmatprep.subr.mxu0 0.0
        %455 = vmatpush1.msra.mxu0 0.0
        %456 = vmatprep.subr.mxu0 0.0
        %457 = vmatpush1.msra.mxu0 0.0
        %458 = vmatprep.subr.mxu0 0.0
        %459 = vmatpush1.msra.mxu0 0.0
        %460 = vmatprep.subr.mxu0 0.0
        %461 = vmatpush1.msra.mxu0 0.0
        %462 = vmatprep.subr.mxu0 0.0
        %463 = vmatpush1.msra.mxu0 0.0
        %464 = vmatprep.subr.mxu0 0.0
        %465 = vmatpush1.msra.mxu0 0.0
        %466 = vmatprep.subr.mxu0 0.0
        %467 = vmatpush1.msra.mxu0 0.0
        %468 = vmatprep.subr.mxu0 0.0
        %469 = vmatpush1.msra.mxu0 0.0
        %470 = vmatprep.subr.mxu0 0.0
        %471 = vmatpush1.msra.mxu0 0.0
        %472 = vmatprep.subr.mxu0 0.0
        %473 = vmatpush1.msra.mxu0 0.0
        %474 = vmatprep.subr.mxu0 0.0
        %475 = vmatpush1.msra.mxu0 0.0
        %476 = vmatprep.subr.mxu0 0.0
        %477 = vmatpush1.msra.mxu0 0.0
        %478 = vmatprep.subr.mxu0 0.0
        %479 = vmatpush1.msra.mxu0 0.0
        %480 = vmatprep.subr.mxu0 0.0
        %481 = vmatpush1.msra.mxu0 0.0
        %482 = vmatprep.subr.mxu0 0.0
        %483 = vmatpush1.msra.mxu0 0.0
        %484 = vmatprep.subr.mxu0 0.0
        %485 = vmatpush1.msra.mxu0 0.0
        %486 = vmatprep.subr.mxu0 0.0
        %487 = vmatpush1.msra.mxu0 0.0
        %488 = vmatprep.subr.mxu0 0.0
        %489 = vmatpush1.msra.mxu0 0.0
        %490 = vmatprep.subr.mxu0 0.0
        %491 = vmatpush1.msra.mxu0 0.0
        %492 = vmatprep.subr.mxu0 0.0
        %493 = vmatpush1.msra.mxu0 0.0
        %494 = vmatprep.subr.mxu0 0.0
        %495 = vmatpush1.msra.mxu0 0.0
        %496 = vmatprep.subr.mxu0 0.0
        %497 = vmatpush1.msra.mxu0 0.0
        %498 = vmatprep.subr.mxu0 0.0
        %499 = vmatpush1.msra.mxu0 0.0
        %500 = vmatprep.subr.mxu0 0.0
        %501 = vmatpush1.msra.mxu0 0.0
        %502 = vmatprep.mubr.f32.mxu0 0.0
        %503 = vmatmul.mubr.f32.gmra.mrb[0].mxu0 %v432
        %v504 = vpop.f32.mrb[0].mxu0
        %v505 = vadd.f32 0.0, %v504
        %v506 = vpop.f32.mrb[0].mxu0
        %507 = vdwg.mxu0
        %v508 = vld [vmem:[%s4] sm:$0xf]
        %v510 = vsel %vm434, %v508, 0
        %512 = vmatprep.subr.mxu0 0.0
        %513 = vmatpush1.msra.mxu0 %v510
        %514 = vmatprep.subr.mxu0 0.0
        %515 = vmatpush1.msra.mxu0 0.0
        %516 = vmatprep.subr.mxu0 0.0
        %517 = vmatpush1.msra.mxu0 0.0
        %518 = vmatprep.subr.mxu0 0.0
        %519 = vmatpush1.msra.mxu0 0.0
        %520 = vmatprep.subr.mxu0 0.0
        %521 = vmatpush1.msra.mxu0 0.0
        %522 = vmatprep.subr.mxu0 0.0
        %523 = vmatpush1.msra.mxu0 0.0
        %524 = vmatprep.subr.mxu0 0.0
        %525 = vmatpush1.msra.mxu0 0.0
        %526 = vmatprep.subr.mxu0 0.0
        %527 = vmatpush1.msra.mxu0 0.0
        %528 = vmatprep.subr.mxu0 0.0
        %529 = vmatpush1.msra.mxu0 0.0
        %530 = vmatprep.subr.mxu0 0.0
        %531 = vmatpush1.msra.mxu0 0.0
        %532 = vmatprep.subr.mxu0 0.0
        %533 = vmatpush1.msra.mxu0 0.0
        %534 = vmatprep.subr.mxu0 0.0
        %535 = vmatpush1.msra.mxu0 0.0
        %536 = vmatprep.subr.mxu0 0.0
        %537 = vmatpush1.msra.mxu0 0.0
        %538 = vmatprep.subr.mxu0 0.0
        %539 = vmatpush1.msra.mxu0 0.0
        %540 = vmatprep.subr.mxu0 0.0
        %541 = vmatpush1.msra.mxu0 0.0
        %542 = vmatprep.subr.mxu0 0.0
        %543 = vmatpush1.msra.mxu0 0.0
        %544 = vmatprep.subr.mxu0 0.0
        %545 = vmatpush1.msra.mxu0 0.0
        %546 = vmatprep.subr.mxu0 0.0
        %547 = vmatpush1.msra.mxu0 0.0
        %548 = vmatprep.subr.mxu0 0.0
        %549 = vmatpush1.msra.mxu0 0.0
        %550 = vmatprep.subr.mxu0 0.0
        %551 = vmatpush1.msra.mxu0 0.0
        %552 = vmatprep.subr.mxu0 0.0
        %553 = vmatpush1.msra.mxu0 0.0
        %554 = vmatprep.subr.mxu0 0.0
        %555 = vmatpush1.msra.mxu0 0.0
        %556 = vmatprep.subr.mxu0 0.0
        %557 = vmatpush1.msra.mxu0 0.0
        %558 = vmatprep.subr.mxu0 0.0
        %559 = vmatpush1.msra.mxu0 0.0
        %560 = vmatprep.subr.mxu0 0.0
        %561 = vmatpush1.msra.mxu0 0.0
        %562 = vmatprep.subr.mxu0 0.0
        %563 = vmatpush1.msra.mxu0 0.0
        %564 = vmatprep.subr.mxu0 0.0
        %565 = vmatpush1.msra.mxu0 0.0
        %566 = vmatprep.subr.mxu0 0.0
        %567 = vmatpush1.msra.mxu0 0.0
        %568 = vmatprep.subr.mxu0 0.0
        %569 = vmatpush1.msra.mxu0 0.0
        %570 = vmatprep.subr.mxu0 0.0
        %571 = vmatpush1.msra.mxu0 0.0
        %572 = vmatprep.subr.mxu0 0.0
        %573 = vmatpush1.msra.mxu0 0.0
        %574 = vmatprep.subr.mxu0 0.0
        %575 = vmatpush1.msra.mxu0 0.0
        %576 = vmatprep.mubr.f32.mxu0 0.0
        %577 = vmatmul.mubr.f32.gmra.mrb[0].mxu0 %v432
        %v578 = vpop.f32.mrb[0].mxu0
        %v579 = vadd.f32 0.0, %v578
        %v580 = vpop.f32.mrb[0].mxu0
        %581 = vdwg.mxu0
        %v582 = vmul.f32 %v505, %v425
        %v583 = vadd.f32 %v582, %v579
        %v584 = vxor.u32 %v583, 2147483648
        %v585 = vmul.f32 %v584, 1.442695
        %v586 = vpow.pop %v585
        %v587 = vadd.f32 %v586, 1.0
        %v588 = vrcp.pop %v587
        %v589 = vmul.f32 1.0, %v588
        %v590 = vld [vmem:[%s5] sm:$0xff]
        %v591 = vld [vmem:[%s5 + $0x8] sm:$0xff]
        %v592 = vld [vmem:[%s5 + $0x10] sm:$0xff]
        %v593 = vld [vmem:[%s5 + $0x18] sm:$0xff]
        %v594 = vld [vmem:[%s5 + $0x20] sm:$0xff]
        %v595 = vld [vmem:[%s5 + $0x28] sm:$0xff]
        %v596 = vld [vmem:[%s5 + $0x30] sm:$0xff]
        %v597 = vld [vmem:[%s5 + $0x38] sm:$0xff]
        %vm598 = vcmask 261120
        %v600 = vsel %vm598, %v589, 0
        %602 = vmatprep.subr.mxu0 %v591
        %603 = vmatpush1.msra.mxu0 %v590
        %604 = vmatprep.subr.mxu0 %v593
        %605 = vmatpush1.msra.mxu0 %v592
        %606 = vmatprep.subr.mxu0 %v595
        %607 = vmatpush1.msra.mxu0 %v594
        %608 = vmatprep.subr.mxu0 %v597
        %609 = vmatpush1.msra.mxu0 %v596
        %610 = vmatprep.subr.mxu0 0.0
        %611 = vmatpush1.msra.mxu0 0.0
        %612 = vmatprep.subr.mxu0 0.0
        %613 = vmatpush1.msra.mxu0 0.0
        %614 = vmatprep.subr.mxu0 0.0
        %615 = vmatpush1.msra.mxu0 0.0
        %616 = vmatprep.subr.mxu0 0.0
        %617 = vmatpush1.msra.mxu0 0.0
        %618 = vmatprep.subr.mxu0 0.0
        %619 = vmatpush1.msra.mxu0 0.0
        %620 = vmatprep.subr.mxu0 0.0
        %621 = vmatpush1.msra.mxu0 0.0
        %622 = vmatprep.subr.mxu0 0.0
        %623 = vmatpush1.msra.mxu0 0.0
        %624 = vmatprep.subr.mxu0 0.0
        %625 = vmatpush1.msra.mxu0 0.0
        %626 = vmatprep.subr.mxu0 0.0
        %627 = vmatpush1.msra.mxu0 0.0
        %628 = vmatprep.subr.mxu0 0.0
        %629 = vmatpush1.msra.mxu0 0.0
        %630 = vmatprep.subr.mxu0 0.0
        %631 = vmatpush1.msra.mxu0 0.0
        %632 = vmatprep.subr.mxu0 0.0
        %633 = vmatpush1.msra.mxu0 0.0
        %634 = vmatprep.subr.mxu0 0.0
        %635 = vmatpush1.msra.mxu0 0.0
        %636 = vmatprep.subr.mxu0 0.0
        %637 = vmatpush1.msra.mxu0 0.0
        %638 = vmatprep.subr.mxu0 0.0
        %639 = vmatpush1.msra.mxu0 0.0
        %640 = vmatprep.subr.mxu0 0.0
        %641 = vmatpush1.msra.mxu0 0.0
        %642 = vmatprep.subr.mxu0 0.0
        %643 = vmatpush1.msra.mxu0 0.0
        %644 = vmatprep.subr.mxu0 0.0
        %645 = vmatpush1.msra.mxu0 0.0
        %646 = vmatprep.subr.mxu0 0.0
        %647 = vmatpush1.msra.mxu0 0.0
        %648 = vmatprep.subr.mxu0 0.0
        %649 = vmatpush1.msra.mxu0 0.0
        %650 = vmatprep.subr.mxu0 0.0
        %651 = vmatpush1.msra.mxu0 0.0
        %652 = vmatprep.subr.mxu0 0.0
        %653 = vmatpush1.msra.mxu0 0.0
        %654 = vmatprep.subr.mxu0 0.0
        %655 = vmatpush1.msra.mxu0 0.0
        %656 = vmatprep.subr.mxu0 0.0
        %657 = vmatpush1.msra.mxu0 0.0
        %658 = vmatprep.subr.mxu0 0.0
        %659 = vmatpush1.msra.mxu0 0.0
        %660 = vmatprep.subr.mxu0 0.0
        %661 = vmatpush1.msra.mxu0 0.0
        %662 = vmatprep.subr.mxu0 0.0
        %663 = vmatpush1.msra.mxu0 0.0
        %664 = vmatprep.subr.mxu0 0.0
        %665 = vmatpush1.msra.mxu0 0.0
        %666 = vmatprep.mubr.f32.mxu0 0.0
        %667 = vmatmul.mubr.f32.gmra.mrb[0].mxu0 %v600
        %v668 = vpop.f32.mrb[0].mxu0
        %v669 = vadd.f32 0.0, %v668
        %v670 = vpop.f32.mrb[0].mxu0
        %v671 = vadd.f32 0.0, %v670
        %672 = vdwg.mxu0
        %v673 = vld [vmem:[%s6] sm:$0xff]
        %v674 = vld [vmem:[%s6 + $0x8] sm:$0xff]
        %v675 = vld [vmem:[%s6 + $0x10] sm:$0xff]
        %v676 = vld [vmem:[%s6 + $0x18] sm:$0xff]
        %v677 = vld [vmem:[%s6 + $0x20] sm:$0xff]
        %v678 = vld [vmem:[%s6 + $0x28] sm:$0xff]
        %v679 = vld [vmem:[%s6 + $0x30] sm:$0xff]
        %v680 = vld [vmem:[%s6 + $0x38] sm:$0xff]
        %681 = vmatprep.subr.mxu0 %v674
        %682 = vmatpush1.msra.mxu0 %v673
        %683 = vmatprep.subr.mxu0 %v676
        %684 = vmatpush1.msra.mxu0 %v675
        %685 = vmatprep.subr.mxu0 %v678
        %686 = vmatpush1.msra.mxu0 %v677
        %687 = vmatprep.subr.mxu0 %v680
        %688 = vmatpush1.msra.mxu0 %v679
        %689 = vmatprep.subr.mxu0 0.0
        %690 = vmatpush1.msra.mxu0 0.0
        %691 = vmatprep.subr.mxu0 0.0
        %692 = vmatpush1.msra.mxu0 0.0
        %693 = vmatprep.subr.mxu0 0.0
        %694 = vmatpush1.msra.mxu0 0.0
        %695 = vmatprep.subr.mxu0 0.0
        %696 = vmatpush1.msra.mxu0 0.0
        %697 = vmatprep.subr.mxu0 0.0
        %698 = vmatpush1.msra.mxu0 0.0
        %699 = vmatprep.subr.mxu0 0.0
        %700 = vmatpush1.msra.mxu0 0.0
        %701 = vmatprep.subr.mxu0 0.0
        %702 = vmatpush1.msra.mxu0 0.0
        %703 = vmatprep.subr.mxu0 0.0
        %704 = vmatpush1.msra.mxu0 0.0
        %705 = vmatprep.subr.mxu0 0.0
        %706 = vmatpush1.msra.mxu0 0.0
        %707 = vmatprep.subr.mxu0 0.0
        %708 = vmatpush1.msra.mxu0 0.0
        %709 = vmatprep.subr.mxu0 0.0
        %710 = vmatpush1.msra.mxu0 0.0
        %711 = vmatprep.subr.mxu0 0.0
        %712 = vmatpush1.msra.mxu0 0.0
        %713 = vmatprep.subr.mxu0 0.0
        %714 = vmatpush1.msra.mxu0 0.0
        %715 = vmatprep.subr.mxu0 0.0
        %716 = vmatpush1.msra.mxu0 0.0
        %717 = vmatprep.subr.mxu0 0.0
        %718 = vmatpush1.msra.mxu0 0.0
        %719 = vmatprep.subr.mxu0 0.0
        %720 = vmatpush1.msra.mxu0 0.0
        %721 = vmatprep.subr.mxu0 0.0
        %722 = vmatpush1.msra.mxu0 0.0
        %723 = vmatprep.subr.mxu0 0.0
        %724 = vmatpush1.msra.mxu0 0.0
        %725 = vmatprep.subr.mxu0 0.0
        %726 = vmatpush1.msra.mxu0 0.0
        %727 = vmatprep.subr.mxu0 0.0
        %728 = vmatpush1.msra.mxu0 0.0
        %729 = vmatprep.subr.mxu0 0.0
        %730 = vmatpush1.msra.mxu0 0.0
        %731 = vmatprep.subr.mxu0 0.0
        %732 = vmatpush1.msra.mxu0 0.0
        %733 = vmatprep.subr.mxu0 0.0
        %734 = vmatpush1.msra.mxu0 0.0
        %735 = vmatprep.subr.mxu0 0.0
        %736 = vmatpush1.msra.mxu0 0.0
        %737 = vmatprep.subr.mxu0 0.0
        %738 = vmatpush1.msra.mxu0 0.0
        %739 = vmatprep.subr.mxu0 0.0
        %740 = vmatpush1.msra.mxu0 0.0
        %741 = vmatprep.subr.mxu0 0.0
        %742 = vmatpush1.msra.mxu0 0.0
        %743 = vmatprep.subr.mxu0 0.0
        %744 = vmatpush1.msra.mxu0 0.0
        %745 = vmatprep.mubr.f32.mxu0 0.0
        %746 = vmatmul.mubr.f32.gmra.mrb[0].mxu0 %v600
        %v747 = vpop.f32.mrb[0].mxu0
        %v748 = vadd.f32 0.0, %v747
        %v749 = vpop.f32.mrb[0].mxu0
        %v750 = vadd.f32 0.0, %v749
        %751 = vdwg.mxu0
        %v754 = vcombine.low %v748, %v750
        %v756 = vmul.f32 %v322, %v754
        %v759 = vcombine.low %v669, %v671
        %v761 = vmul.f32 %v756, %v759
        %762 = vst [vmem:[%s308] sm:$0xff] %v761
        %s763 = sand.u32 %s202, 1
        %s764 = scalar_lea.sflag [#allocation3], %s763
        %s765 = sand.u32 %s202, 1
        %s766 = smul.addr %s765, 8
        %s767 = scalar_lea.vmem [#allocation2], %s766
        // Predicated region
        $region49: #{tpu_custom_call.1} parent=47 // pred_check
          %p768 = pneg %p212
        $region50: #{tpu_custom_call.1} parent=47 // pred_check_branch
          %770 = sbr.rel (%p768) target = $region52
        $region51: #{tpu_custom_call.1} parent=47 // pred_region
          %s772 = ssub.s32 128, 128
          %773 = vsyncadd %s764, %s772
          %s774 = smul.addr %s26, 2
          %s775 = smul.addr %s25, 2
          %s776 = sadd.s32 %s774, %s775
          %s777 = smul.addr %s776, 64
          %s778 = scalar_lea.hbm %s7, %s777
          %s780 = sshll.u32 %s767, 4
          %s781 = int_to_ptr.vmem [resolvable:$true] %s780
          %783 = dma.vmem_to_hbm [thread:$0]  %s781, 128, %s778, %s764
        $region52: #{tpu_custom_call.1} parent=47 // pred_fallthru
          _
      $region48: #{tpu_custom_call.1} parent=5 // pred_fallthru
        _
      %p784 = scmp.le.s32.totalorder 2, %s16
      // Predicated region
      $region53: #{tpu_custom_call.1} parent=5 // pred_check
        %p785 = pneg %p784
      $region54: #{tpu_custom_call.1} parent=5 // pred_check_branch
        %787 = sbr.rel (%p785) target = $region56
      $region55: #{tpu_custom_call.1} parent=5 // pred_region
        %s788 = ssub.s32 %s16, 2
        // Predicated region
        $region57: #{tpu_custom_call.1} parent=55 // pred_check
          %p789 = pneg %p218
        $region58: #{tpu_custom_call.1} parent=55 // pred_check_branch
          %791 = sbr.rel (%p789) target = $region60
        $region59: #{tpu_custom_call.1} parent=55 // pred_region
          %s792 = sand.u32 %s203, 1
          %s793 = scalar_lea.sflag [#allocation3], %s792
          %s794 = sand.u32 %s203, 1
          %s795 = smul.addr %s794, 8
          %s796 = scalar_lea.vmem [#allocation2], %s795
          %797 = dma.done %s793, 128
        $region60: #{tpu_custom_call.1} parent=55 // pred_fallthru
          _
      $region56: #{tpu_custom_call.1} parent=5 // pred_fallthru
        _
    $region6: #{tpu_custom_call.1} parent=1 // loop_footer
      %s20 = sadd.s32 1, %s16
    $region7: #{tpu_custom_call.1} parent=1 // loop_footer_branch
      %15 = sbr.rel target = $region3
    $region8: #{tpu_custom_call.1} parent=1 // loop_exit
      _
    %798 = vsyncpa [#allocation3], 1
    %s799 = scalar_lea.sflag [#allocation3], 1
    %800 = vsyncpa %s799, 1

</llo_original>
